<compile_context>
chip_gen: v7x
topology: tpu7x:2x2x1
jax: 0.10.0
libtpu: 0.0.40
codegen_flags: <defaults>
</compile_context>

<pallas_src>
import numpy as np
import jax
import jax.numpy as jnp
from jax.experimental import pallas as pl
from jax.experimental.pallas import tpu as pltpu


def _round_up(v, m):
    return (v + m - 1) // m * m


def _linear_interp_matrix(in_size, out_size):
    """(in_size, out_size) matrix implementing F.interpolate(mode='linear', align_corners=True)."""
    m = np.zeros((in_size, out_size), dtype=np.float32)
    for j in range(out_size):
        if out_size == 1 or in_size == 1:
            src = 0.0
        else:
            src = j * (in_size - 1) / (out_size - 1)
        lo = min(int(np.floor(src)), in_size - 1)
        hi = min(lo + 1, in_size - 1)
        t = src - lo
        m[lo, j] += 1.0 - t
        m[hi, j] += t
    return m


def _blockdiag_interp_matrix(batch, in_size, out_size, rows_pad, cols_pad):
    """Block-diagonal interpolation operator acting on the lane-folded (b*L) layout."""
    m = _linear_interp_matrix(in_size, out_size)
    big = np.zeros((rows_pad, cols_pad), dtype=np.float32)
    for b in range(batch):
        big[b * in_size:(b + 1) * in_size, b * out_size:(b + 1) * out_size] = m
    return big


def _make_kernel(n_valid_cols, eps):
    inv_n = float(1.0 / n_valid_cols)

    def kernel(xT_ref, w_ref, b_ref, g_ref, beta_ref, m_ref, o_ref):
        # xT_ref : (C_in, BLp)     lane-folded input, resident across the grid
        # w_ref  : (tile_co, C_in) conv weight tile (no transpose needed: y = W @ X)
        # b/g/beta_ref : (tile_co, 1) conv bias / BN gamma / BN beta
        # m_ref  : (BLp, BSp)      block-diagonal interpolation matrix, resident
        # o_ref  : (tile_co, BSp)
        x = xT_ref[...]
        w = w_ref[...]
        # pointwise Conv1d == channel matmul on the MXU, f32 accumulation
        y = jnp.dot(w, x, preferred_element_type=jnp.float32) + b_ref[...]

        # BatchNorm1d (training-mode batch statistics, biased variance) over the valid
        # B*L lane columns only (lane padding is excluded via a static iota mask).
        # Single pass: sum and sum-of-squares -> mean / var.
        col = jax.lax.broadcasted_iota(jnp.int32, y.shape, 1)
        valid = (col < n_valid_cols).astype(jnp.float32)
        yv = y * valid
        mean = jnp.sum(yv, axis=1, keepdims=True) * jnp.float32(inv_n)
        ex2 = jnp.sum(yv * y, axis=1, keepdims=True) * jnp.float32(inv_n)
        var = jnp.maximum(ex2 - mean * mean, 0.0)
        scale = g_ref[...] * jax.lax.rsqrt(var + jnp.float32(eps))
        yn = (y - mean) * scale + beta_ref[...]

        # linear interpolation (align_corners=True) as a lane-dense matmul; padded
        # rows of m_ref are zero, so padded lane columns of yn contribute nothing.
        o = jnp.dot(yn, m_ref[...], preferred_element_type=jnp.float32)
        o_ref[...] = o.astype(o_ref.dtype)

    return kernel


def fusion_up_block(x, conv_w, conv_b, bn_gamma, bn_beta, interpolate_size, *,
                    eps=1e-5, compute_dtype=jnp.float32):
    """Pallas equivalent of FusionUpBlock.forward.

    Args:
        x: (B, C_in, L) transformer features.
        conv_w: Conv1d weight, (C_out, C_in) or (C_out, C_in, 1).
        conv_b: (C_out,) Conv1d bias.
        bn_gamma, bn_beta: (C_out,) BatchNorm1d affine parameters.
        interpolate_size: output length S.
    Returns:
        (B, C_out, S) array.
    """
    B, C_in, L = x.shape
    C_out = conv_w.shape[0]
    S = int(interpolate_size)

    BL, BS = B * L, B * S
    BLp, BSp = _round_up(BL, 128), _round_up(BS, 128)

    # Output-channel tile: multiple of 8 (sublane), capped at 128; if that leaves a
    # single grid step, split once so both v7x TensorCores get work.
    tile_co = 128 if C_out >= 128 else _round_up(C_out, 8)
    c_out_pad = _round_up(C_out, tile_co)
    if c_out_pad // tile_co == 1 and tile_co % 16 == 0:
        tile_co //= 2
    n_steps = c_out_pad // tile_co

    # Wrapper-side layout plumbing: ONE transpose of the input; weight is NOT transposed.
    xT = jnp.transpose(x, (1, 0, 2)).reshape(C_in, BL).astype(compute_dtype)
    xT = jnp.pad(xT, ((0, 0), (0, BLp - BL)))
    w = conv_w.reshape(C_out, C_in).astype(compute_dtype)
    w = jnp.pad(w, ((0, c_out_pad - C_out), (0, 0)))
    b = jnp.pad(conv_b.astype(jnp.float32), (0, c_out_pad - C_out)).reshape(c_out_pad, 1)
    g = jnp.pad(bn_gamma.astype(jnp.float32), (0, c_out_pad - C_out)).reshape(c_out_pad, 1)
    bt = jnp.pad(bn_beta.astype(jnp.float32), (0, c_out_pad - C_out)).reshape(c_out_pad, 1)

    # Block-diagonal interpolation operator (zero-padded to 128-lane multiples).
    # TODO(synk): this holds O(B^2*L*S) mostly-zero entries; for large batches switch to
    #             a per-batch interpolation pass / second tiled matmul.
    m_big = jnp.asarray(_blockdiag_interp_matrix(B, L, S, BLp, BSp), dtype=jnp.float32)

    # VMEM budget (double-buffered worst case + in-kernel intermediates) with headroom,
    # capped at v7x's 64 MiB so the same limit is valid on v5e/v6e/v7x.
    itemsize = jnp.dtype(compute_dtype).itemsize
    blk_bytes = (C_in * BLp * itemsize          # resident input
                 + BLp * BSp * 4                # resident interp matrix
                 + tile_co * C_in * itemsize    # weight tile
                 + 3 * tile_co * 4              # bias / gamma / beta tiles
                 + tile_co * BSp * 4            # output tile
                 + 3 * tile_co * BLp * 4)       # intermediates (y, yv, yn)
    vmem_limit = int(min(64 * 1024 * 1024,
                         max(16 * 1024 * 1024, 2 * blk_bytes + (4 << 20))))

    kernel = _make_kernel(BL, eps)
    out = pl.pallas_call(
        kernel,
        out_shape=jax.ShapeDtypeStruct((c_out_pad, BSp), x.dtype),
        grid_spec=pltpu.PrefetchScalarGridSpec(
            num_scalar_prefetch=0,
            grid=(n_steps,),
            in_specs=[
                pl.BlockSpec((C_in, BLp), lambda i: (0, 0)),      # input (resident)
                pl.BlockSpec((tile_co, C_in), lambda i: (i, 0)),  # conv weight tile
                pl.BlockSpec((tile_co, 1), lambda i: (i, 0)),     # conv bias
                pl.BlockSpec((tile_co, 1), lambda i: (i, 0)),     # bn gamma
                pl.BlockSpec((tile_co, 1), lambda i: (i, 0)),     # bn beta
                pl.BlockSpec((BLp, BSp), lambda i: (0, 0)),       # interp matrix (resident)
            ],
            out_specs=pl.BlockSpec((tile_co, BSp), lambda i: (i, 0)),
        ),
        compiler_params=pltpu.CompilerParams(
            dimension_semantics=("parallel",),
            vmem_limit_bytes=vmem_limit,
        ),
    )(xT, w, b, g, bt, m_big)

    # Strip channel / lane padding, restore (B, C_out, S).
    out = out[:C_out, :BS].reshape(C_out, B, S)
    return jnp.transpose(out, (1, 0, 2))
    # TODO(synk): BatchNorm1d running_mean/running_var momentum updates are training-time
    #             state, not part of the forward output, and are not modeled here.


if __name__ == "__main__":
    # Small shapes consistent with the module: (B, C_in, L) -> (B, C_out, interpolate_size).
    B, C_in, C_out, L, S = 2, 8, 4, 16, 32

    key = jax.random.PRNGKey(0)
    kx, kw, kb, kg, kbe = jax.random.split(key, 5)

    x = jax.random.normal(kx, (B, C_in, L), dtype=jnp.float32)
    bound = 1.0 / (C_in ** 0.5)
    conv_w = jax.random.uniform(kw, (C_out, C_in), minval=-bound, maxval=bound, dtype=jnp.float32)
    conv_b = jax.random.uniform(kb, (C_out,), minval=-bound, maxval=bound, dtype=jnp.float32)
    bn_gamma = 1.0 + 0.1 * jax.random.normal(kg, (C_out,), dtype=jnp.float32)
    bn_beta = 0.1 * jax.random.normal(kbe, (C_out,), dtype=jnp.float32)

    out = fusion_up_block(x, conv_w, conv_b, bn_gamma, bn_beta, S)
    out = jax.block_until_ready(out)

    # Pure-JAX reference of the PyTorch forward (training-mode BatchNorm, biased variance).
    eps = 1e-5
    y = jnp.einsum('oi,bil->bol', conv_w, x) + conv_b[None, :, None]
    mean = y.mean(axis=(0, 2), keepdims=True)
    var = y.var(axis=(0, 2), keepdims=True)
    yn = (y - mean) / jnp.sqrt(var + eps) * bn_gamma[None, :, None] + bn_beta[None, :, None]
    m = jnp.asarray(_linear_interp_matrix(L, S), dtype=jnp.float32)
    ref = jnp.einsum('bol,ls->bos', yn, m)

    assert out.shape == (B, C_out, S), out.shape
    err = float(jnp.max(jnp.abs(out - ref)))
    assert jnp.allclose(out, ref, atol=1e-4, rtol=1e-4), f"mismatch vs reference, max err {err}"

    print("KERNEL_OK")
</pallas_src>

<mosaic_0001>
module attributes {stable_mosaic.version = 11 : i64} {
  func.func @kernel(%arg0: i32, %arg1: memref<8x128xf32, #tpu.memory_space<vmem>>, %arg2: memref<8x8xf32, #tpu.memory_space<vmem>>, %arg3: memref<8x1xf32, #tpu.memory_space<vmem>>, %arg4: memref<8x1xf32, #tpu.memory_space<vmem>>, %arg5: memref<8x1xf32, #tpu.memory_space<vmem>>, %arg6: memref<128x128xf32, #tpu.memory_space<vmem>>, %arg7: memref<8x128xf32, #tpu.memory_space<vmem>>) attributes {dimension_semantics = [#tpu.dimension_semantics<parallel>], iteration_bounds = array<i64: 1>, scalar_prefetch = 0 : i64, scratch_operands = 0 : i64, tpu.core_type = #tpu.core_type<tc>, window_params = [{pipeline_mode = #tpu.pipeline_mode<synchronous>, transform_indices = @transform_0, window_bounds = array<i64: 8, 128>}, {transform_indices = @transform_1, window_bounds = array<i64: 8, 8>}, {transform_indices = @transform_2, window_bounds = array<i64: 8, 1>}, {transform_indices = @transform_3, window_bounds = array<i64: 8, 1>}, {transform_indices = @transform_4, window_bounds = array<i64: 8, 1>}, {pipeline_mode = #tpu.pipeline_mode<synchronous>, transform_indices = @transform_5, window_bounds = array<i64: 128, 128>}, {transform_indices = @transform_6, window_bounds = array<i64: 8, 128>}]} {
    %c0 = arith.constant 0 : index
    %c0_0 = arith.constant 0 : index
    %0 = vector.load %arg1[%c0, %c0_0] : memref<8x128xf32, #tpu.memory_space<vmem>>, vector<8x128xf32>
    %c0_1 = arith.constant 0 : index
    %c0_2 = arith.constant 0 : index
    %1 = vector.load %arg2[%c0_1, %c0_2] : memref<8x8xf32, #tpu.memory_space<vmem>>, vector<8x8xf32>
    %cst = arith.constant dense<0.000000e+00> : vector<8x128xf32>
    %2 = tpu.matmul %1, %0, %cst {dimension_numbers = #tpu.dot_dimension_numbers<[1], [0], [0], [1], [0, 0, 1, 1], [], []>} : vector<8x8xf32>, vector<8x128xf32>, vector<8x128xf32> -> vector<8x128xf32>
    %c0_3 = arith.constant 0 : index
    %c0_4 = arith.constant 0 : index
    %3 = vector.load %arg3[%c0_3, %c0_4] : memref<8x1xf32, #tpu.memory_space<vmem>>, vector<8x1xf32>
    %4 = vector.broadcast %3 : vector<8x1xf32> to vector<8x128xf32>
    %5 = arith.addf %2, %4 : vector<8x128xf32>
    %6 = tpu.iota {dimensions = array<i32: 1>} : vector<8x128xi32>
    %c32_i32 = arith.constant 32 : i32
    %7 = vector.broadcast %c32_i32 : i32 to vector<8x128xi32>
    %8 = arith.cmpi slt, %6, %7 : vector<8x128xi32>
    %9 = arith.extui %8 : vector<8x128xi1> to vector<8x128xi32>
    %10 = arith.sitofp %9 : vector<8x128xi32> to vector<8x128xf32>
    %11 = arith.mulf %5, %10 : vector<8x128xf32>
    %cst_5 = arith.constant dense<0.000000e+00> : vector<8xf32>
    %12 = vector.multi_reduction <add>, %11, %cst_5 [1] : vector<8x128xf32> to vector<8xf32>
    %13 = vector.shape_cast %12 : vector<8xf32> to vector<8x1xf32>
    %cst_6 = arith.constant 3.125000e-02 : f32
    %14 = vector.broadcast %cst_6 : f32 to vector<8x1xf32>
    %15 = arith.mulf %13, %14 : vector<8x1xf32>
    %16 = arith.mulf %11, %5 : vector<8x128xf32>
    %cst_7 = arith.constant dense<0.000000e+00> : vector<8xf32>
    %17 = vector.multi_reduction <add>, %16, %cst_7 [1] : vector<8x128xf32> to vector<8xf32>
    %18 = vector.shape_cast %17 : vector<8xf32> to vector<8x1xf32>
    %cst_8 = arith.constant 3.125000e-02 : f32
    %19 = vector.broadcast %cst_8 : f32 to vector<8x1xf32>
    %20 = arith.mulf %18, %19 : vector<8x1xf32>
    %21 = arith.mulf %15, %15 : vector<8x1xf32>
    %22 = arith.subf %20, %21 : vector<8x1xf32>
    %cst_9 = arith.constant 0.000000e+00 : f32
    %23 = vector.broadcast %cst_9 : f32 to vector<8x1xf32>
    %24 = arith.maximumf %22, %23 : vector<8x1xf32>
    %c0_10 = arith.constant 0 : index
    %c0_11 = arith.constant 0 : index
    %25 = vector.load %arg4[%c0_10, %c0_11] : memref<8x1xf32, #tpu.memory_space<vmem>>, vector<8x1xf32>
    %cst_12 = arith.constant 9.99999974E-6 : f32
    %26 = vector.broadcast %cst_12 : f32 to vector<8x1xf32>
    %27 = arith.addf %24, %26 : vector<8x1xf32>
    %28 = math.rsqrt %27 : vector<8x1xf32>
    %29 = arith.mulf %25, %28 : vector<8x1xf32>
    %30 = vector.broadcast %15 : vector<8x1xf32> to vector<8x128xf32>
    %31 = arith.subf %5, %30 : vector<8x128xf32>
    %32 = vector.broadcast %29 : vector<8x1xf32> to vector<8x128xf32>
    %33 = arith.mulf %31, %32 : vector<8x128xf32>
    %c0_13 = arith.constant 0 : index
    %c0_14 = arith.constant 0 : index
    %34 = vector.load %arg5[%c0_13, %c0_14] : memref<8x1xf32, #tpu.memory_space<vmem>>, vector<8x1xf32>
    %35 = vector.broadcast %34 : vector<8x1xf32> to vector<8x128xf32>
    %36 = arith.addf %33, %35 : vector<8x128xf32>
    %c0_15 = arith.constant 0 : index
    %c0_16 = arith.constant 0 : index
    %37 = vector.load %arg6[%c0_15, %c0_16] : memref<128x128xf32, #tpu.memory_space<vmem>>, vector<128x128xf32>
    %cst_17 = arith.constant dense<0.000000e+00> : vector<8x128xf32>
    %38 = tpu.matmul %36, %37, %cst_17 {dimension_numbers = #tpu.dot_dimension_numbers<[1], [0], [0], [1], [0, 0, 1, 1], [], []>} : vector<8x128xf32>, vector<128x128xf32>, vector<8x128xf32> -> vector<8x128xf32>
    %c0_18 = arith.constant 0 : index
    %c0_19 = arith.constant 0 : index
    %39 = vector.load %arg7[%c0_18, %c0_19] : memref<8x128xf32, #tpu.memory_space<vmem>>, vector<8x128xf32>
    tpu.vector_store %arg7[%c0_18, %c0_19], %38 {strides = array<i32>} : memref<8x128xf32, #tpu.memory_space<vmem>>, vector<8x128xf32>,
    return
  }
  func.func @transform_0(%arg0: i32) -> (i32, i32) {
    %c0_i32 = arith.constant 0 : i32
    %c0_i32_0 = arith.constant 0 : i32
    %c0_i32_1 = arith.constant 0 : i32
    return %c0_i32, %c0_i32_0 : i32, i32
  }
  func.func @transform_1(%arg0: i32) -> (i32, i32) {
    %c0_i32 = arith.constant 0 : i32
    %c0_i32_0 = arith.constant 0 : i32
    return %arg0, %c0_i32 : i32, i32
  }
  func.func @transform_2(%arg0: i32) -> (i32, i32) {
    %c0_i32 = arith.constant 0 : i32
    %c0_i32_0 = arith.constant 0 : i32
    return %arg0, %c0_i32 : i32, i32
  }
  func.func @transform_3(%arg0: i32) -> (i32, i32) {
    %c0_i32 = arith.constant 0 : i32
    %c0_i32_0 = arith.constant 0 : i32
    return %arg0, %c0_i32 : i32, i32
  }
  func.func @transform_4(%arg0: i32) -> (i32, i32) {
    %c0_i32 = arith.constant 0 : i32
    %c0_i32_0 = arith.constant 0 : i32
    return %arg0, %c0_i32 : i32, i32
  }
  func.func @transform_5(%arg0: i32) -> (i32, i32) {
    %c0_i32 = arith.constant 0 : i32
    %c0_i32_0 = arith.constant 0 : i32
    %c0_i32_1 = arith.constant 0 : i32
    return %c0_i32, %c0_i32_0 : i32, i32
  }
  func.func @transform_6(%arg0: i32) -> (i32, i32) {
    %c0_i32 = arith.constant 0 : i32
    %c0_i32_0 = arith.constant 0 : i32
    return %arg0, %c0_i32 : i32, i32
  }
}

</mosaic_0001>

<llo_original>
// kernel: tpu_custom_call.1
$region0: #{tpu_custom_call.1}
  #allocation0 [shape = 'u32[]', space=smem, size = 0x4, offset = 0x4, fixed_abs, tag = 'smem constant byte address 0x4 - core index']
  #allocation1 [shape = 'u32[144,128]{1,0:T(1,128)}', space=vmem, size = 0x12000, scoped, tag = 'internal scratch']
  %s0 = inlined_call_operand.vmem [shape: f32[8,128], index: 0, kind: input, shape index: {}]
  %s1 = inlined_call_operand.vmem [shape: f32[8,8], index: 1, kind: input, shape index: {}]
  %s2 = inlined_call_operand.vmem [shape: f32[8,1], index: 2, kind: input, shape index: {}]
  %s3 = inlined_call_operand.vmem [shape: f32[8,1], index: 3, kind: input, shape index: {}]
  %s4 = inlined_call_operand.vmem [shape: f32[8,1], index: 4, kind: input, shape index: {}]
  %s5 = inlined_call_operand.hbm [shape: f32[128,128], index: 5, kind: input, shape index: {}]
  %s6 = inlined_call_operand.hbm [shape: f32[8,128], index: 6, kind: output, shape index: {}]
  %s7 = sld [smem:[#allocation0]]
  $region38: #{tpu_custom_call.1} parent=0
    _
  %s9 = ssub.s32 1, %s7
  %s10 = scalar_select 0, %s9, %s7
  $region1: #{tpu_custom_call.1} parent=0
    #allocation2 [shape = 'u8[65536]{0}', space=vmem, size = 0x10000, scoped, tag = 'input window, operand 5, single buffered']
    #allocation3 [shape = 's32[1]{0}', space=sflag, size = 0x4, scoped, tag = 'scoped memory for tpu_custom_call.1']
    #allocation4 [shape = 's32[1]{0}', space=sflag, size = 0x4, scoped, tag = 'scoped memory for tpu_custom_call.1']
    #allocation5 [shape = 'u8[4096]{0}', space=vmem, size = 0x1000, scoped, tag = 'output window, operand 0, single buffered']
    %11 = vsyncpa [#allocation3], 0
    %12 = vsyncpa [#allocation4], 0
    // Predicated region
    $region2: #{tpu_custom_call.1} parent=1 // pred_check
      _
    $region3: #{tpu_custom_call.1} parent=1 // pred_check_branch
      %14 = sbr.rel (0) target = $region5
    $region4: #{tpu_custom_call.1} parent=1 // pred_region
      _
    $region5: #{tpu_custom_call.1} parent=1 // pred_fallthru
      _
    // Predicated region
    $region6: #{tpu_custom_call.1} parent=1 // pred_check
      _
    $region7: #{tpu_custom_call.1} parent=1 // pred_check_branch
      %16 = sbr.rel (0) target = $region9
    $region8: #{tpu_custom_call.1} parent=1 // pred_region
      _
    $region9: #{tpu_custom_call.1} parent=1 // pred_fallthru
      _
    // Predicated region
    $region10: #{tpu_custom_call.1} parent=1 // pred_check
      _
    $region11: #{tpu_custom_call.1} parent=1 // pred_check_branch
      %18 = sbr.rel (0) target = $region13
    $region12: #{tpu_custom_call.1} parent=1 // pred_region
      _
    $region13: #{tpu_custom_call.1} parent=1 // pred_fallthru
      _
    // Predicated region
    $region14: #{tpu_custom_call.1} parent=1 // pred_check
      _
    $region15: #{tpu_custom_call.1} parent=1 // pred_check_branch
      %20 = sbr.rel (0) target = $region17
    $region16: #{tpu_custom_call.1} parent=1 // pred_region
      _
    $region17: #{tpu_custom_call.1} parent=1 // pred_fallthru
      _
    // Predicated region
    $region18: #{tpu_custom_call.1} parent=1 // pred_check
      _
    $region19: #{tpu_custom_call.1} parent=1 // pred_check_branch
      %22 = sbr.rel (0) target = $region21
    $region20: #{tpu_custom_call.1} parent=1 // pred_region
      _
    $region21: #{tpu_custom_call.1} parent=1 // pred_fallthru
      _
    // Predicated region
    $region22: #{tpu_custom_call.1} parent=1 // pred_check
      _
    $region23: #{tpu_custom_call.1} parent=1 // pred_check_branch
      %24 = sbr.rel (0) target = $region25
    $region24: #{tpu_custom_call.1} parent=1 // pred_region
      %s26 = ssub.s32 2048, 2048
      %27 = vsyncadd [#allocation3], %s26
      %s28 = sshll.u32 [#allocation2], 4
      %s29 = int_to_ptr.vmem [resolvable:$true] %s28
      %34 = dma.hbm_to_vmem [thread:$0]  %s5, 2048, %s29, [#allocation3], 128, 128, 8
    $region25: #{tpu_custom_call.1} parent=1 // pred_fallthru
      _
    // Predicated region
    $region26: #{tpu_custom_call.1} parent=1 // pred_check
      _
    $region27: #{tpu_custom_call.1} parent=1 // pred_check_branch
      %36 = sbr.rel (0) target = $region29
    $region28: #{tpu_custom_call.1} parent=1 // pred_region
      %37 = dma.done [#allocation3], 2048
    $region29: #{tpu_custom_call.1} parent=1 // pred_fallthru
      _
    %v38 = vld [vmem:[%s0] sm:$0xff]
    %v39 = vld [vmem:[%s1] sm:$0xff]
    %v40 = vld [vmem:[%s2] sm:$0xff]
    %42 = vset.pattern.permute.xlu0 0
    %43 = vperm.xlu0 %42, %v40
    %v44 = vpop.permute.xlu0 %43
    %vm46 = vcmask 64512
    %v48 = vsel %vm46, %v39, 0
    %50 = vmatprep.subr.mxu0 0.0
    %51 = vmatpush1.msra.mxu0 %v38
    %52 = vmatprep.subr.mxu0 0.0
    %53 = vmatpush1.msra.mxu0 0.0
    %54 = vmatprep.subr.mxu0 0.0
    %55 = vmatpush1.msra.mxu0 0.0
    %56 = vmatprep.subr.mxu0 0.0
    %57 = vmatpush1.msra.mxu0 0.0
    %58 = vmatprep.subr.mxu0 0.0
    %59 = vmatpush1.msra.mxu0 0.0
    %60 = vmatprep.subr.mxu0 0.0
    %61 = vmatpush1.msra.mxu0 0.0
    %62 = vmatprep.subr.mxu0 0.0
    %63 = vmatpush1.msra.mxu0 0.0
    %64 = vmatprep.subr.mxu0 0.0
    %65 = vmatpush1.msra.mxu0 0.0
    %66 = vmatprep.subr.mxu0 0.0
    %67 = vmatpush1.msra.mxu0 0.0
    %68 = vmatprep.subr.mxu0 0.0
    %69 = vmatpush1.msra.mxu0 0.0
    %70 = vmatprep.subr.mxu0 0.0
    %71 = vmatpush1.msra.mxu0 0.0
    %72 = vmatprep.subr.mxu0 0.0
    %73 = vmatpush1.msra.mxu0 0.0
    %74 = vmatprep.subr.mxu0 0.0
    %75 = vmatpush1.msra.mxu0 0.0
    %76 = vmatprep.subr.mxu0 0.0
    %77 = vmatpush1.msra.mxu0 0.0
    %78 = vmatprep.subr.mxu0 0.0
    %79 = vmatpush1.msra.mxu0 0.0
    %80 = vmatprep.subr.mxu0 0.0
    %81 = vmatpush1.msra.mxu0 0.0
    %82 = vmatprep.subr.mxu0 0.0
    %83 = vmatpush1.msra.mxu0 0.0
    %84 = vmatprep.subr.mxu0 0.0
    %85 = vmatpush1.msra.mxu0 0.0
    %86 = vmatprep.subr.mxu0 0.0
    %87 = vmatpush1.msra.mxu0 0.0
    %88 = vmatprep.subr.mxu0 0.0
    %89 = vmatpush1.msra.mxu0 0.0
    %90 = vmatprep.subr.mxu0 0.0
    %91 = vmatpush1.msra.mxu0 0.0
    %92 = vmatprep.subr.mxu0 0.0
    %93 = vmatpush1.msra.mxu0 0.0
    %94 = vmatprep.subr.mxu0 0.0
    %95 = vmatpush1.msra.mxu0 0.0
    %96 = vmatprep.subr.mxu0 0.0
    %97 = vmatpush1.msra.mxu0 0.0
    %98 = vmatprep.subr.mxu0 0.0
    %99 = vmatpush1.msra.mxu0 0.0
    %100 = vmatprep.subr.mxu0 0.0
    %101 = vmatpush1.msra.mxu0 0.0
    %102 = vmatprep.subr.mxu0 0.0
    %103 = vmatpush1.msra.mxu0 0.0
    %104 = vmatprep.subr.mxu0 0.0
    %105 = vmatpush1.msra.mxu0 0.0
    %106 = vmatprep.subr.mxu0 0.0
    %107 = vmatpush1.msra.mxu0 0.0
    %108 = vmatprep.subr.mxu0 0.0
    %109 = vmatpush1.msra.mxu0 0.0
    %110 = vmatprep.subr.mxu0 0.0
    %111 = vmatpush1.msra.mxu0 0.0
    %112 = vmatprep.subr.mxu0 0.0
    %113 = vmatpush1.msra.mxu0 0.0
    %114 = vmatprep.mubr.f32.mxu0 0.0
    %115 = vmatmul.mubr.f32.gmra.mrb[0].mxu0 %v48
    %v116 = vpop.f32.mrb[0].mxu0
    %v117 = vadd.f32 %v44, %v116
    %v118 = vpop.f32.mrb[0].mxu0
    %119 = vdwg.mxu0
    %v120 = vlaneseq
    %v121 = vand.u32 %v120, 127
    %vm122 = vcmp.lt.s32.totalorder %v121, 32
    %v123 = vsel %vm122, 1, 0
    %v124 = vcvt.s32.f32 %v123
    %v125 = vmul.f32 %v117, %v124
    %126 = vadd.xlane.f32.xlu0 %v125
    %v127 = vpop.xlane.xlu0 %126
    %v128 = vmul.f32 %v127, 0.03125
    %v129 = vmul.f32 %v125, %v117
    %130 = vadd.xlane.f32.xlu0 %v129
    %v131 = vpop.xlane.xlu0 %130
    %v132 = vmul.f32 %v131, 0.03125
    %v133 = vmul.f32 %v128, %v128
    %v134 = vsub.f32 %v132, %v133
    %v135 = vmax.f32 %v134, 0.0
    %v136 = vld [vmem:[%s3] sm:$0xff]
    %v137 = vadd.f32 %v135, 1e-05
    %v138 = vrsqrt.pop %v137
    %v139 = vmul.f32 %v136, %v138
    %v140 = vsub.f32 %v117, %v128
    %142 = vset.pattern.permute.xlu0 0
    %143 = vperm.xlu0 %142, %v139
    %v144 = vpop.permute.xlu0 %143
    %v146 = vmul.f32 %v140, %v144
    %v147 = vld [vmem:[%s4] sm:$0xff]
    %149 = vset.pattern.permute.xlu0 0
    %150 = vperm.xlu0 %149, %v147
    %v151 = vpop.permute.xlu0 %150
    %v153 = vadd.f32 %v146, %v151
    %v154 = vld [vmem:[#allocation2] sm:$0xff]
    %v155 = vld [vmem:[#allocation2 + $0x8] sm:$0xff]
    %v156 = vld [vmem:[#allocation2 + $0x10] sm:$0xff]
    %v157 = vld [vmem:[#allocation2 + $0x18] sm:$0xff]
    %v158 = vld [vmem:[#allocation2 + $0x20] sm:$0xff]
    %v159 = vld [vmem:[#allocation2 + $0x28] sm:$0xff]
    %v160 = vld [vmem:[#allocation2 + $0x30] sm:$0xff]
    %v161 = vld [vmem:[#allocation2 + $0x38] sm:$0xff]
    %v162 = vld [vmem:[#allocation2 + $0x40] sm:$0xff]
    %v163 = vld [vmem:[#allocation2 + $0x48] sm:$0xff]
    %v164 = vld [vmem:[#allocation2 + $0x50] sm:$0xff]
    %v165 = vld [vmem:[#allocation2 + $0x58] sm:$0xff]
    %v166 = vld [vmem:[#allocation2 + $0x60] sm:$0xff]
    %v167 = vld [vmem:[#allocation2 + $0x68] sm:$0xff]
    %v168 = vld [vmem:[#allocation2 + $0x70] sm:$0xff]
    %v169 = vld [vmem:[#allocation2 + $0x78] sm:$0xff]
    %170 = vmatprep.subr.mxu0 0.0
    %171 = vmatpush1.msra.mxu0 %v154
    %172 = vmatprep.subr.mxu0 0.0
    %173 = vmatpush1.msra.mxu0 %v155
    %174 = vmatprep.subr.mxu0 0.0
    %175 = vmatpush1.msra.mxu0 %v156
    %176 = vmatprep.subr.mxu0 0.0
    %177 = vmatpush1.msra.mxu0 %v157
    %178 = vmatprep.subr.mxu0 0.0
    %179 = vmatpush1.msra.mxu0 %v158
    %180 = vmatprep.subr.mxu0 0.0
    %181 = vmatpush1.msra.mxu0 %v159
    %182 = vmatprep.subr.mxu0 0.0
    %183 = vmatpush1.msra.mxu0 %v160
    %184 = vmatprep.subr.mxu0 0.0
    %185 = vmatpush1.msra.mxu0 %v161
    %186 = vmatprep.subr.mxu0 0.0
    %187 = vmatpush1.msra.mxu0 %v162
    %188 = vmatprep.subr.mxu0 0.0
    %189 = vmatpush1.msra.mxu0 %v163
    %190 = vmatprep.subr.mxu0 0.0
    %191 = vmatpush1.msra.mxu0 %v164
    %192 = vmatprep.subr.mxu0 0.0
    %193 = vmatpush1.msra.mxu0 %v165
    %194 = vmatprep.subr.mxu0 0.0
    %195 = vmatpush1.msra.mxu0 %v166
    %196 = vmatprep.subr.mxu0 0.0
    %197 = vmatpush1.msra.mxu0 %v167
    %198 = vmatprep.subr.mxu0 0.0
    %199 = vmatpush1.msra.mxu0 %v168
    %200 = vmatprep.subr.mxu0 0.0
    %201 = vmatpush1.msra.mxu0 %v169
    %202 = vmatprep.subr.mxu0 0.0
    %203 = vmatpush1.msra.mxu0 0.0
    %204 = vmatprep.subr.mxu0 0.0
    %205 = vmatpush1.msra.mxu0 0.0
    %206 = vmatprep.subr.mxu0 0.0
    %207 = vmatpush1.msra.mxu0 0.0
    %208 = vmatprep.subr.mxu0 0.0
    %209 = vmatpush1.msra.mxu0 0.0
    %210 = vmatprep.subr.mxu0 0.0
    %211 = vmatpush1.msra.mxu0 0.0
    %212 = vmatprep.subr.mxu0 0.0
    %213 = vmatpush1.msra.mxu0 0.0
    %214 = vmatprep.subr.mxu0 0.0
    %215 = vmatpush1.msra.mxu0 0.0
    %216 = vmatprep.subr.mxu0 0.0
    %217 = vmatpush1.msra.mxu0 0.0
    %218 = vmatprep.subr.mxu0 0.0
    %219 = vmatpush1.msra.mxu0 0.0
    %220 = vmatprep.subr.mxu0 0.0
    %221 = vmatpush1.msra.mxu0 0.0
    %222 = vmatprep.subr.mxu0 0.0
    %223 = vmatpush1.msra.mxu0 0.0
    %224 = vmatprep.subr.mxu0 0.0
    %225 = vmatpush1.msra.mxu0 0.0
    %226 = vmatprep.subr.mxu0 0.0
    %227 = vmatpush1.msra.mxu0 0.0
    %228 = vmatprep.subr.mxu0 0.0
    %229 = vmatpush1.msra.mxu0 0.0
    %230 = vmatprep.subr.mxu0 0.0
    %231 = vmatpush1.msra.mxu0 0.0
    %232 = vmatprep.subr.mxu0 0.0
    %233 = vmatpush1.msra.mxu0 0.0
    %234 = vmatprep.mubr.f32.mxu0 0.0
    %235 = vmatmul.mubr.f32.gmra.mrb[0].mxu0 %v153
    %v236 = vpop.f32.mrb[0].mxu0
    %v237 = vadd.f32 0.0, %v236
    %v238 = vpop.f32.mrb[0].mxu0
    %239 = vdwg.mxu0
    %240 = vst [vmem:[#allocation5] sm:$0xff] %v237
    // Predicated region
    $region30: #{tpu_custom_call.1} parent=1 // pred_check
      _
    $region31: #{tpu_custom_call.1} parent=1 // pred_check_branch
      %242 = sbr.rel (0) target = $region33
    $region32: #{tpu_custom_call.1} parent=1 // pred_region
      %s244 = ssub.s32 128, 128
      %245 = vsyncadd [#allocation4], %s244
      %s247 = sshll.u32 [#allocation5], 4
      %s248 = int_to_ptr.vmem [resolvable:$true] %s247
      %250 = dma.vmem_to_hbm [thread:$0]  %s248, 128, %s6, [#allocation4]
    $region33: #{tpu_custom_call.1} parent=1 // pred_fallthru
      _
    // Predicated region
    $region34: #{tpu_custom_call.1} parent=1 // pred_check
      _
    $region35: #{tpu_custom_call.1} parent=1 // pred_check_branch
      %252 = sbr.rel (0) target = $region37
    $region36: #{tpu_custom_call.1} parent=1 // pred_region
      %253 = dma.done [#allocation4], 128
    $region37: #{tpu_custom_call.1} parent=1 // pred_fallthru
      _
    %254 = vsyncpa [#allocation3], 1
    %255 = vsyncpa [#allocation4], 1

</llo_original>
